<compile_context>
chip_gen: v7x
topology: tpu7x:2x2x1
jax: 0.10.0
libtpu: 0.0.40
codegen_flags: <defaults>
</compile_context>

<pallas_src>
import functools
import math

import jax
import jax.numpy as jnp
from jax.experimental import pallas as pl
from jax.experimental.pallas import tpu as pltpu

_LANE = 128  # lane width: last-dim tiling


def _round_up(x, m):
    return (x + m - 1) // m * m


def _sublane_align(itemsize):
    # native sublane tile: 8 rows (f32) / 16 (bf16) / 32 (int8, fp8)
    return max(8, 32 // int(itemsize))


def _vmem_capacity_bytes():
    """Per-core VMEM capacity (falls back to the v7x-safe 64 MiB)."""
    try:
        info = pltpu.get_tpu_info()
        for name in ("vmem_capacity_bytes", "vmem_size_bytes", "vmem_bytes"):
            cap = getattr(info, name, None)
            if cap:
                return int(cap)
    except Exception:
        pass
    return 64 * 1024 * 1024


def _pooler_kernel(x_ref, wt_ref, b_ref, o_ref):
    """One tile of tanh(x @ W^T + b).  f32 MXU accumulation, tanh on the EUP."""
    y = jnp.dot(x_ref[...], wt_ref[...], preferred_element_type=jnp.float32)
    y = y + b_ref[...].astype(jnp.float32)
    o_ref[...] = jnp.tanh(y).astype(o_ref.dtype)


def prepare_pooler_params(weight, bias, compute_dtype=None):
    """One-time parameter prep.  Call at init / param-load time, NOT per step.

    weight: [H, H] (nn.Linear convention, [out, in]);  bias: [H].
    Returns (w_t, bias2d): weight pre-transposed to [in, out] and zero-padded
    so both dims are multiples of 128 (a no-op for real BERT H = 768 / 1024).
    """
    h_out, h_in = weight.shape
    if compute_dtype is not None:
        weight = weight.astype(compute_dtype)
    w_t = weight.T  # [in, out]
    hp_in, hp_out = _round_up(h_in, _LANE), _round_up(h_out, _LANE)
    if (hp_in, hp_out) != (h_in, h_out):
        w_t = jnp.pad(w_t, ((0, hp_in - h_in), (0, hp_out - h_out)))
        bias = jnp.pad(bias, (0, hp_out - h_out))
    bias2d = bias.reshape(1, hp_out).astype(jnp.float32)
    return w_t, bias2d


@functools.partial(jax.jit, static_argnames=("block_batch", "compute_dtype"))
def pooler_apply(hidden_states, w_t, bias2d, *, block_batch=None, compute_dtype=None):
    """tanh(hidden_states @ W^T + b) with prepared params.

    hidden_states: [..., H];  w_t: [Hp, Hp] (pre-transposed / pre-padded);
    bias2d: [1, Hp].  Returns an array with the same shape/dtype as the input.
    """
    orig_shape = hidden_states.shape
    h = orig_shape[-1]
    rows = int(math.prod(orig_shape[:-1]))
    hp = w_t.shape[1]
    out_dtype = hidden_states.dtype

    x = hidden_states.reshape(rows, h)
    if compute_dtype is not None:
        x = x.astype(compute_dtype)
    # Zero-pad ONLY the contraction dim (garbage in K would corrupt the matmul;
    # garbage rows in a ragged batch block are merely masked on store).
    if hp != h:
        x = jnp.pad(x, ((0, 0), (0, hp - h)))

    x_item = jnp.dtype(x.dtype).itemsize
    w_item = jnp.dtype(w_t.dtype).itemsize
    o_item = jnp.dtype(out_dtype).itemsize
    align = _sublane_align(min(x_item, o_item))

    cap = _vmem_capacity_bytes()
    if block_batch is None:
        # Bigger batch tiles on 128-MiB-VMEM chips (v5e/v6e); 512 is v7x-safe.
        block_batch = 1024 if cap >= 96 * 1024 * 1024 else 512

    cost = pl.CostEstimate(
        flops=2 * rows * hp * hp,
        transcendentals=rows * hp,
        bytes_accessed=rows * hp * (x_item + o_item) + hp * hp * w_item + hp * 4,
    )

    if rows > block_batch:
        # ---- Large-batch path: stream x/out over balanced batch tiles, keep
        # W^T / bias VMEM-resident (DMA'd once via constant index_map).
        n_tiles = max(2, pl.cdiv(rows, block_batch))
        if n_tiles % 2:
            n_tiles += 1  # even tile count -> both v7x TensorCores stay busy
        tb = min(_round_up(pl.cdiv(rows, n_tiles), align), _round_up(rows, align))
        grid = (pl.cdiv(rows, tb),)  # ragged final block handled by Pallas
        in_specs = [
            pl.BlockSpec((tb, hp), lambda i: (i, 0)),  # x: tiled over batch
            pl.BlockSpec((hp, hp), lambda i: (0, 0)),  # W^T: resident
            pl.BlockSpec((1, hp), lambda i: (0, 0)),   # bias: resident
        ]
        out_specs = pl.BlockSpec((tb, hp), lambda i: (i, 0))
        needed = (2 * tb * hp * (x_item + o_item)      # x / out, double-buffered
                  + 2 * hp * hp * w_item               # W^T (counted as 2 bufs)
                  + 2 * hp * 4)                        # bias
    else:
        # ---- Small-batch path: keep x resident and stream W^T / bias over the
        # output dim so the weight DMA pipelines against MXU work.
        tn = 256 if hp % 256 == 0 else (128 if hp % 128 == 0 else hp)
        grid = (hp // tn,)
        in_specs = [
            pl.BlockSpec((rows, hp), lambda j: (0, 0)),  # x: resident
            pl.BlockSpec((hp, tn), lambda j: (0, j)),    # W^T: streamed over N
            pl.BlockSpec((1, tn), lambda j: (0, j)),     # bias: streamed over N
        ]
        out_specs = pl.BlockSpec((rows, tn), lambda j: (0, j))
        needed = (2 * rows * hp * x_item
                  + 2 * hp * tn * w_item
                  + 2 * rows * tn * o_item
                  + 2 * tn * 4)

    # VMEM limit: generous on 128-MiB chips, conservative (< physical) on v7x.
    vmem_cap = max(32 * 1024 * 1024, min(cap - 12 * 1024 * 1024, 112 * 1024 * 1024))
    vmem_limit = int(max(32 * 1024 * 1024, min(needed + needed // 2, vmem_cap)))

    out = pl.pallas_call(
        _pooler_kernel,
        out_shape=jax.ShapeDtypeStruct((rows, hp), out_dtype),
        grid_spec=pl.GridSpec(grid=grid, in_specs=in_specs, out_specs=out_specs),
        compiler_params=pltpu.CompilerParams(
            dimension_semantics=("parallel",),
            vmem_limit_bytes=vmem_limit,
        ),
        cost_estimate=cost,
    )(x, w_t, bias2d)

    if hp != h:
        out = out[:, :h]
    return out.reshape(orig_shape)


def pooler(hidden_states, weight, bias, *, block_batch=None, compute_dtype=None):
    """Convenience wrapper (prep + apply).  For production, call
    prepare_pooler_params() ONCE and reuse the prepared params every step."""
    w_t, bias2d = prepare_pooler_params(weight, bias, compute_dtype=compute_dtype)
    return pooler_apply(hidden_states, w_t, bias2d,
                        block_batch=block_batch, compute_dtype=compute_dtype)


def sentence_bert_head(hidden_states, w_t, bias2d, pooling_mode="mean"):
    """Post-encoder head of SentenceBert: Pooler(Linear+Tanh) then mean / cls."""
    # TODO(synk): the pretrained BertModel encoder itself is not re-implemented.
    pooled = pooler_apply(hidden_states, w_t, bias2d)
    if pooling_mode == "mean":
        return pooled.mean(axis=1)
    if pooling_mode == "cls":
        return pooled[:, 0, :]
    raise ValueError(f"Invalid pooling mode: {pooling_mode}")


if __name__ == "__main__":
    key = jax.random.PRNGKey(0)
    kx, kw, kb, kx2, kw2, kb2 = jax.random.split(key, 6)

    # --- Test 1: small 3-D shape matching SentenceBert usage ([B, S, H]) -----
    # Exercises the small-batch path (x resident, W^T streamed over N) and the
    # hidden-dim padding (H=32 -> 128; real BERT H=768/1024 never pads).
    B, S, H = 2, 8, 32
    hs = jax.random.normal(kx, (B, S, H), dtype=jnp.float32)
    w = jax.random.normal(kw, (H, H), dtype=jnp.float32) * 0.02
    b = jax.random.normal(kb, (H,), dtype=jnp.float32) * 0.02

    w_t, b2d = prepare_pooler_params(w, b)  # one-time parameter prep
    out = pooler_apply(hs, w_t, b2d)
    jax.block_until_ready(out)
    ref = jnp.tanh(jnp.einsum("bsh,oh->bso", hs, w) + b)
    assert out.shape == (B, S, H)
    assert jnp.allclose(out, ref, atol=1e-4, rtol=1e-4)

    emb_mean = sentence_bert_head(hs, w_t, b2d, "mean")
    emb_cls = sentence_bert_head(hs, w_t, b2d, "cls")
    jax.block_until_ready((emb_mean, emb_cls))
    assert jnp.allclose(emb_mean, ref.mean(axis=1), atol=1e-4, rtol=1e-4)
    assert jnp.allclose(emb_cls, ref[:, 0, :], atol=1e-4, rtol=1e-4)

    # --- Test 2: force the batch-tiled path with a ragged final block --------
    # 150 rows, block_batch=64 -> 4 balanced tiles of 40 rows (last one ragged).
    B2, S2, H2 = 2, 75, 128
    hs2 = jax.random.normal(kx2, (B2, S2, H2), dtype=jnp.float32)
    w2 = jax.random.normal(kw2, (H2, H2), dtype=jnp.float32) * 0.02
    b2 = jax.random.normal(kb2, (H2,), dtype=jnp.float32) * 0.02
    w2_t, b2_2d = prepare_pooler_params(w2, b2)
    out2 = pooler_apply(hs2, w2_t, b2_2d, block_batch=64)
    jax.block_until_ready(out2)
    ref2 = jnp.tanh(jnp.einsum("bsh,oh->bso", hs2, w2) + b2)
    assert out2.shape == (B2, S2, H2)
    assert jnp.allclose(out2, ref2, atol=1e-4, rtol=1e-4)

    print("KERNEL_OK")
</pallas_src>

<mosaic_0001>
module attributes {stable_mosaic.version = 11 : i64} {
  func.func @_pooler_kernel(%arg0: i32, %arg1: memref<16x128xf32, #tpu.memory_space<vmem>>, %arg2: memref<128x128xf32, #tpu.memory_space<vmem>>, %arg3: memref<1x128xf32, #tpu.memory_space<vmem>>, %arg4: memref<16x128xf32, #tpu.memory_space<vmem>>) attributes {dimension_semantics = [#tpu.dimension_semantics<parallel>], iteration_bounds = array<i64: 1>, scalar_prefetch = 0 : i64, scratch_operands = 0 : i64, tpu.core_type = #tpu.core_type<tc>, window_params = [{pipeline_mode = #tpu.pipeline_mode<synchronous>, transform_indices = @transform_0, window_bounds = array<i64: 16, 128>}, {transform_indices = @transform_1, window_bounds = array<i64: 128, 128>}, {transform_indices = @transform_2, window_bounds = array<i64: 1, 128>}, {transform_indices = @transform_3, window_bounds = array<i64: 16, 128>}]} {
    %c0 = arith.constant 0 : index
    %c0_0 = arith.constant 0 : index
    %0 = vector.load %arg1[%c0, %c0_0] : memref<16x128xf32, #tpu.memory_space<vmem>>, vector<16x128xf32>
    %c0_1 = arith.constant 0 : index
    %c0_2 = arith.constant 0 : index
    %1 = vector.load %arg2[%c0_1, %c0_2] : memref<128x128xf32, #tpu.memory_space<vmem>>, vector<128x128xf32>
    %cst = arith.constant dense<0.000000e+00> : vector<16x128xf32>
    %2 = tpu.matmul %0, %1, %cst {dimension_numbers = #tpu.dot_dimension_numbers<[1], [0], [0], [1], [0, 0, 1, 1], [], []>} : vector<16x128xf32>, vector<128x128xf32>, vector<16x128xf32> -> vector<16x128xf32>
    %c0_3 = arith.constant 0 : index
    %c0_4 = arith.constant 0 : index
    %3 = vector.load %arg3[%c0_3, %c0_4] : memref<1x128xf32, #tpu.memory_space<vmem>>, vector<1x128xf32>
    %4 = vector.broadcast %3 : vector<1x128xf32> to vector<16x128xf32>
    %5 = arith.addf %2, %4 : vector<16x128xf32>
    %6 = math.tanh %5 : vector<16x128xf32>
    %c0_5 = arith.constant 0 : index
    %c0_6 = arith.constant 0 : index
    %7 = vector.load %arg4[%c0_5, %c0_6] : memref<16x128xf32, #tpu.memory_space<vmem>>, vector<16x128xf32>
    tpu.vector_store %arg4[%c0_5, %c0_6], %6 {strides = array<i32>} : memref<16x128xf32, #tpu.memory_space<vmem>>, vector<16x128xf32>,
    return
  }
  func.func @transform_0(%arg0: i32) -> (i32, i32) {
    %c0_i32 = arith.constant 0 : i32
    %c0_i32_0 = arith.constant 0 : i32
    %c0_i32_1 = arith.constant 0 : i32
    return %c0_i32, %c0_i32_0 : i32, i32
  }
  func.func @transform_1(%arg0: i32) -> (i32, i32) {
    %c0_i32 = arith.constant 0 : i32
    %c0_i32_0 = arith.constant 0 : i32
    return %c0_i32, %arg0 : i32, i32
  }
  func.func @transform_2(%arg0: i32) -> (i32, i32) {
    %c0_i32 = arith.constant 0 : i32
    %c0_i32_0 = arith.constant 0 : i32
    return %c0_i32, %arg0 : i32, i32
  }
  func.func @transform_3(%arg0: i32) -> (i32, i32) {
    %c0_i32 = arith.constant 0 : i32
    %c0_i32_0 = arith.constant 0 : i32
    return %c0_i32, %arg0 : i32, i32
  }
}

</mosaic_0001>

<llo_original>
// kernel: pooler_apply.1
$region0: #{pooler_apply.1}
  #allocation0 [shape = 'u32[]', space=smem, size = 0x4, offset = 0x4, fixed_abs, tag = 'smem constant byte address 0x4 - core index']
  #allocation1 [shape = 'u32[144,128]{1,0:T(1,128)}', space=vmem, size = 0x12000, scoped, tag = 'internal scratch']
  %s0 = inlined_call_operand.vmem [shape: f32[16,128], index: 0, kind: input, shape index: {}]
  %s1 = inlined_call_operand.hbm [shape: f32[128,128], index: 1, kind: input, shape index: {}]
  %s2 = inlined_call_operand.vmem [shape: f32[1,128], index: 2, kind: input, shape index: {}]
  %s3 = inlined_call_operand.vmem [shape: f32[16,128], index: 3, kind: output, shape index: {}]
  %s4 = sld [smem:[#allocation0]]
  $region26: #{pooler_apply.1} parent=0
    _
  %s6 = ssub.s32 1, %s4
  %s7 = scalar_select 0, %s6, %s4
  $region1: #{pooler_apply.1} parent=0
    #allocation2 [shape = 'u8[65536]{0}', space=vmem, size = 0x10000, scoped, tag = 'input window, operand 1, single buffered']
    #allocation3 [shape = 's32[1]{0}', space=sflag, size = 0x4, scoped, tag = 'scoped memory for pooler_apply.1']
    %8 = vsyncpa [#allocation3], 0
    // Predicated region
    $region2: #{pooler_apply.1} parent=1 // pred_check
      _
    $region3: #{pooler_apply.1} parent=1 // pred_check_branch
      %10 = sbr.rel (0) target = $region5
    $region4: #{pooler_apply.1} parent=1 // pred_region
      _
    $region5: #{pooler_apply.1} parent=1 // pred_fallthru
      _
    // Predicated region
    $region6: #{pooler_apply.1} parent=1 // pred_check
      _
    $region7: #{pooler_apply.1} parent=1 // pred_check_branch
      %12 = sbr.rel (0) target = $region9
    $region8: #{pooler_apply.1} parent=1 // pred_region
      %s14 = ssub.s32 2048, 2048
      %15 = vsyncadd [#allocation3], %s14
      %s16 = sshll.u32 [#allocation2], 4
      %s17 = int_to_ptr.vmem [resolvable:$true] %s16
      %22 = dma.hbm_to_vmem [thread:$0]  %s1, 2048, %s17, [#allocation3], 128, 128, 8
    $region9: #{pooler_apply.1} parent=1 // pred_fallthru
      _
    // Predicated region
    $region10: #{pooler_apply.1} parent=1 // pred_check
      _
    $region11: #{pooler_apply.1} parent=1 // pred_check_branch
      %24 = sbr.rel (0) target = $region13
    $region12: #{pooler_apply.1} parent=1 // pred_region
      _
    $region13: #{pooler_apply.1} parent=1 // pred_fallthru
      _
    // Predicated region
    $region14: #{pooler_apply.1} parent=1 // pred_check
      _
    $region15: #{pooler_apply.1} parent=1 // pred_check_branch
      %26 = sbr.rel (0) target = $region17
    $region16: #{pooler_apply.1} parent=1 // pred_region
      %27 = dma.done [#allocation3], 2048
    $region17: #{pooler_apply.1} parent=1 // pred_fallthru
      _
    %v28 = vld [vmem:[%s0] sm:$0xff]
    %v29 = vld [vmem:[%s0 + $0x8] sm:$0xff]
    %v30 = vld [vmem:[#allocation2] sm:$0xff]
    %v31 = vld [vmem:[#allocation2 + $0x8] sm:$0xff]
    %v32 = vld [vmem:[#allocation2 + $0x10] sm:$0xff]
    %v33 = vld [vmem:[#allocation2 + $0x18] sm:$0xff]
    %v34 = vld [vmem:[#allocation2 + $0x20] sm:$0xff]
    %v35 = vld [vmem:[#allocation2 + $0x28] sm:$0xff]
    %v36 = vld [vmem:[#allocation2 + $0x30] sm:$0xff]
    %v37 = vld [vmem:[#allocation2 + $0x38] sm:$0xff]
    %v38 = vld [vmem:[#allocation2 + $0x40] sm:$0xff]
    %v39 = vld [vmem:[#allocation2 + $0x48] sm:$0xff]
    %v40 = vld [vmem:[#allocation2 + $0x50] sm:$0xff]
    %v41 = vld [vmem:[#allocation2 + $0x58] sm:$0xff]
    %v42 = vld [vmem:[#allocation2 + $0x60] sm:$0xff]
    %v43 = vld [vmem:[#allocation2 + $0x68] sm:$0xff]
    %v44 = vld [vmem:[#allocation2 + $0x70] sm:$0xff]
    %v45 = vld [vmem:[#allocation2 + $0x78] sm:$0xff]
    %v46 = vld [vmem:[%s2] sm:$0x1]
    %v48 = vlaneseq
    %v49 = vshrl.u32 %v48, 7
    %v50 = vsub.s32 0, %v49
    %v51 = vrot.slane %v46, %v50
    %53 = vmatprep.subr.mxu0 0.0
    %54 = vmatpush1.msra.mxu0 %v30
    %55 = vmatprep.subr.mxu0 0.0
    %56 = vmatpush1.msra.mxu0 %v31
    %57 = vmatprep.subr.mxu0 0.0
    %58 = vmatpush1.msra.mxu0 %v32
    %59 = vmatprep.subr.mxu0 0.0
    %60 = vmatpush1.msra.mxu0 %v33
    %61 = vmatprep.subr.mxu0 0.0
    %62 = vmatpush1.msra.mxu0 %v34
    %63 = vmatprep.subr.mxu0 0.0
    %64 = vmatpush1.msra.mxu0 %v35
    %65 = vmatprep.subr.mxu0 0.0
    %66 = vmatpush1.msra.mxu0 %v36
    %67 = vmatprep.subr.mxu0 0.0
    %68 = vmatpush1.msra.mxu0 %v37
    %69 = vmatprep.subr.mxu0 0.0
    %70 = vmatpush1.msra.mxu0 %v38
    %71 = vmatprep.subr.mxu0 0.0
    %72 = vmatpush1.msra.mxu0 %v39
    %73 = vmatprep.subr.mxu0 0.0
    %74 = vmatpush1.msra.mxu0 %v40
    %75 = vmatprep.subr.mxu0 0.0
    %76 = vmatpush1.msra.mxu0 %v41
    %77 = vmatprep.subr.mxu0 0.0
    %78 = vmatpush1.msra.mxu0 %v42
    %79 = vmatprep.subr.mxu0 0.0
    %80 = vmatpush1.msra.mxu0 %v43
    %81 = vmatprep.subr.mxu0 0.0
    %82 = vmatpush1.msra.mxu0 %v44
    %83 = vmatprep.subr.mxu0 0.0
    %84 = vmatpush1.msra.mxu0 %v45
    %85 = vmatprep.subr.mxu0 0.0
    %86 = vmatpush1.msra.mxu0 0.0
    %87 = vmatprep.subr.mxu0 0.0
    %88 = vmatpush1.msra.mxu0 0.0
    %89 = vmatprep.subr.mxu0 0.0
    %90 = vmatpush1.msra.mxu0 0.0
    %91 = vmatprep.subr.mxu0 0.0
    %92 = vmatpush1.msra.mxu0 0.0
    %93 = vmatprep.subr.mxu0 0.0
    %94 = vmatpush1.msra.mxu0 0.0
    %95 = vmatprep.subr.mxu0 0.0
    %96 = vmatpush1.msra.mxu0 0.0
    %97 = vmatprep.subr.mxu0 0.0
    %98 = vmatpush1.msra.mxu0 0.0
    %99 = vmatprep.subr.mxu0 0.0
    %100 = vmatpush1.msra.mxu0 0.0
    %101 = vmatprep.subr.mxu0 0.0
    %102 = vmatpush1.msra.mxu0 0.0
    %103 = vmatprep.subr.mxu0 0.0
    %104 = vmatpush1.msra.mxu0 0.0
    %105 = vmatprep.subr.mxu0 0.0
    %106 = vmatpush1.msra.mxu0 0.0
    %107 = vmatprep.subr.mxu0 0.0
    %108 = vmatpush1.msra.mxu0 0.0
    %109 = vmatprep.subr.mxu0 0.0
    %110 = vmatpush1.msra.mxu0 0.0
    %111 = vmatprep.subr.mxu0 0.0
    %112 = vmatpush1.msra.mxu0 0.0
    %113 = vmatprep.subr.mxu0 0.0
    %114 = vmatpush1.msra.mxu0 0.0
    %115 = vmatprep.subr.mxu0 0.0
    %116 = vmatpush1.msra.mxu0 0.0
    %117 = vmatprep.mubr.f32.mxu0 0.0
    %118 = vmatmul.mubr.f32.gmra.mrb[0].mxu0 %v28
    %v119 = vpop.f32.mrb[0].mxu0
    %v120 = vadd.f32 %v51, %v119
    %v121 = vpop.f32.mrb[0].mxu0
    %122 = vmatprep.mubr.f32.mxu0 0.0
    %123 = vmatmul.mubr.f32.gmra.mrb[0].mxu0 %v29
    %v124 = vpop.f32.mrb[0].mxu0
    %v125 = vadd.f32 %v51, %v124
    %v126 = vpop.f32.mrb[0].mxu0
    %127 = vdwg.mxu0
    %v128 = vtanh.pop %v120
    %v129 = vtanh.pop %v125
    %130 = vst [vmem:[%s3] sm:$0xff] %v128
    %131 = vst [vmem:[%s3 + $0x8] sm:$0xff] %v129
    // Predicated region
    $region18: #{pooler_apply.1} parent=1 // pred_check
      _
    $region19: #{pooler_apply.1} parent=1 // pred_check_branch
      %133 = sbr.rel (0) target = $region21
    $region20: #{pooler_apply.1} parent=1 // pred_region
      _
    $region21: #{pooler_apply.1} parent=1 // pred_fallthru
      _
    // Predicated region
    $region22: #{pooler_apply.1} parent=1 // pred_check
      _
    $region23: #{pooler_apply.1} parent=1 // pred_check_branch
      %135 = sbr.rel (0) target = $region25
    $region24: #{pooler_apply.1} parent=1 // pred_region
      _
    $region25: #{pooler_apply.1} parent=1 // pred_fallthru
      _
    %136 = vsyncpa [#allocation3], 1

</llo_original>
